<compile_context>
chip_gen: v6e
topology: v6e:2x2x1
jax: 0.10.0
libtpu: 0.0.40
codegen_flags: <defaults>
</compile_context>

<pallas_src>
import jax
import jax.numpy as jnp
from jax.experimental import pallas as pl
from jax.experimental.pallas import tpu as pltpu

_F = 3                    # model feature dim (INPUT_DIM == OUTPUT_DIM == (3,))
_GROUP = 128              # samples packed per "wide" row (batch on the lane axis)
_LANE = _F * _GROUP       # 384 lanes per wide row (multiple of 128 -> dense stores)
_MIN_KERNEL_ROWS = 512    # below this a plain XLA dot beats a kernel launch


def _fold_weights(w1, w2, w3, w4):
    """fc4(fc2(fc1(x)) + 2*fc3(fc1(x))) == x @ W_eff (one-time 3x3 fold)."""
    w1t = jnp.asarray(w1, jnp.float32).T
    w2t = jnp.asarray(w2, jnp.float32).T
    w3t = jnp.asarray(w3, jnp.float32).T
    w4t = jnp.asarray(w4, jnp.float32).T
    return w1t @ (w2t + 2.0 * w3t) @ w4t                      # (3, 3), y = x @ W_eff


def _coeff_table(w_eff):
    """Per-lane stencil coefficients for the lane-dense formulation.

    Wide layout: wide[r, 3*s + k] = x[r*_GROUP + s, k].  For output lane
    l = 3*s + j we need  y[l] = sum_k wide[l + (k - j)] * W_eff[k, j], i.e. a
    5-diagonal stencil along the lane axis.  Row (d + 2) holds the coefficient
    of the lane-offset-d neighbour; out-of-group offsets get coefficient 0, so
    roll wrap-around never contaminates a valid output.
    """
    j = jnp.arange(_LANE) % _F
    rows = []
    for d in range(-2, 3):
        k = j + d
        valid = (k >= 0) & (k < _F)
        kc = jnp.clip(k, 0, _F - 1)
        rows.append(jnp.where(valid, w_eff[kc, j], 0.0))
    table = jnp.stack(rows, axis=0).astype(jnp.float32)        # (5, _LANE)
    return jnp.pad(table, ((0, 8 - table.shape[0]), (0, 0)))   # (8, _LANE), sublane-aligned


def _fork_join_kernel(x_ref, c_ref, o_ref):
    # x_ref: (tb, 384) tile = 128 samples * 3 features per row (lane-dense).
    # c_ref: (8, 384) stencil coefficients (rows 0..4 used), resident in VMEM.
    x = x_ref[...].astype(jnp.float32)
    c = c_ref[...]
    lane = x.shape[-1]
    # 5-point stencil along lanes: rolls run on the XLU, mul/add on the VPU,
    # so the MXU is never involved (contraction dim is only 3).
    acc = x * c[2:3, :]
    acc = acc + pltpu.roll(x, shift=lane - 1, axis=1) * c[3:4, :]   # neighbour x[l + 1]
    acc = acc + pltpu.roll(x, shift=lane - 2, axis=1) * c[4:5, :]   # neighbour x[l + 2]
    acc = acc + pltpu.roll(x, shift=1, axis=1) * c[1:2, :]          # neighbour x[l - 1]
    acc = acc + pltpu.roll(x, shift=2, axis=1) * c[0:1, :]          # neighbour x[l - 2]
    o_ref[...] = acc.astype(o_ref.dtype)


def fork_join_forward(x, w1, w2, w3, w4, *, tile_rows=2048):
    """Fused ForkJoinModel forward.  x: (B, 3); w*: (3, 3) PyTorch-layout weights.

    tile_rows counts wide rows (128 samples each): 2048 -> 3 MiB per buffer,
    ~12 MiB of double-buffered VMEM, which fits v5e/v6e/v7x under the explicit
    32 MiB scoped-VMEM limit while amortizing the ~0.35 us per-step overhead.
    """
    assert x.ndim == 2 and x.shape[1] == _F, "expected (batch, 3) input"
    B = x.shape[0]
    w_eff = _fold_weights(w1, w2, w3, w4)

    # Small-batch bypass: one tiny XLA dot beats the pallas_call fixed cost.
    if B < _MIN_KERNEL_ROWS:
        return (x.astype(jnp.float32) @ w_eff).astype(x.dtype)

    n_wide = B // _GROUP
    b_main = n_wide * _GROUP
    # Free contiguous reshape: batch lands on the lane axis (no transpose, no pad).
    x_wide = x[:b_main].reshape(n_wide, _LANE)
    coeffs = _coeff_table(w_eff)

    tb = min(tile_rows, n_wide)
    grid = (pl.cdiv(n_wide, tb),)          # ragged last block instead of jnp.pad

    out_wide = pl.pallas_call(
        _fork_join_kernel,
        out_shape=jax.ShapeDtypeStruct((n_wide, _LANE), x.dtype),
        grid=grid,
        in_specs=[
            pl.BlockSpec((tb, _LANE), lambda i: (i, 0)),    # activations, streamed
            pl.BlockSpec((8, _LANE), lambda i: (0, 0)),     # stencil coeffs, resident
        ],
        out_specs=pl.BlockSpec((tb, _LANE), lambda i: (i, 0)),
        compiler_params=pltpu.CompilerParams(
            # Row axis is independent -> shard across both v7x TensorCores
            # (harmless single-core on v5e/v6e).
            dimension_semantics=("parallel",),
            # Explicit scoped-VMEM limit (v5e defaults to 16 MiB; v7x has 64 MiB/TC).
            vmem_limit_bytes=32 * 1024 * 1024,
        ),
    )(x_wide, coeffs)

    y = out_wide.reshape(b_main, _F)
    if b_main == B:
        return y
    # Fewer than 128 leftover rows: finish with a tiny XLA dot.
    y_tail = (x[b_main:].astype(jnp.float32) @ w_eff).astype(x.dtype)
    return jnp.concatenate([y, y_tail], axis=0)


if __name__ == "__main__":
    w = jnp.array([[0.1, 0.2, 0.3],
                   [0.4, 0.5, 0.6],
                   [0.7, 0.8, 0.9]], dtype=jnp.float32)
    w1, w2, w3, w4 = w, w, w, w

    def reference(x):
        h = x @ w1.T
        y1 = h @ w2.T
        y2 = (h @ w3.T) * 2.0
        return (y1 + y2) @ w4.T

    # Main check: goes through the Pallas kernel (B >= 512); the 3 leftover rows
    # exercise the XLA tail path.
    batch = 2051
    x = jax.random.normal(jax.random.PRNGKey(0), (batch, _F), dtype=jnp.float32)
    out = jax.block_until_ready(fork_join_forward(x, w1, w2, w3, w4))
    assert out.shape == (batch, _F) and out.dtype == x.dtype
    assert jnp.allclose(out, reference(x), rtol=1e-5, atol=1e-5), "mismatch (kernel path)"

    # Multi-step grid with a ragged last block (tile_rows=8 wide rows, grid=3).
    batch2 = 23 * 128 + 3
    x2 = jax.random.normal(jax.random.PRNGKey(1), (batch2, _F), dtype=jnp.float32)
    out2 = jax.block_until_ready(fork_join_forward(x2, w1, w2, w3, w4, tile_rows=8))
    assert jnp.allclose(out2, reference(x2), rtol=1e-5, atol=1e-5), "mismatch (ragged grid)"

    # Tiny-batch bypass path (plain XLA, no kernel launch).
    x3 = jax.random.normal(jax.random.PRNGKey(2), (4, _F), dtype=jnp.float32)
    out3 = jax.block_until_ready(fork_join_forward(x3, w1, w2, w3, w4))
    assert jnp.allclose(out3, reference(x3), rtol=1e-5, atol=1e-5), "mismatch (bypass)"

    print("KERNEL_OK")
</pallas_src>

<mosaic_0001>
module attributes {stable_mosaic.version = 11 : i64} {
  func.func @_fork_join_kernel(%arg0: i32, %arg1: memref<16x384xf32, #tpu.memory_space<vmem>>, %arg2: memref<8x384xf32, #tpu.memory_space<vmem>>, %arg3: memref<16x384xf32, #tpu.memory_space<vmem>>) attributes {dimension_semantics = [#tpu.dimension_semantics<parallel>], iteration_bounds = array<i64: 1>, scalar_prefetch = 0 : i64, scratch_operands = 0 : i64, tpu.core_type = #tpu.core_type<tc>, window_params = [{transform_indices = @transform_0, window_bounds = array<i64: 16, 384>}, {pipeline_mode = #tpu.pipeline_mode<synchronous>, transform_indices = @transform_1, window_bounds = array<i64: 8, 384>}, {transform_indices = @transform_2, window_bounds = array<i64: 16, 384>}]} {
    %c0 = arith.constant 0 : index
    %c0_0 = arith.constant 0 : index
    %0 = vector.load %arg1[%c0, %c0_0] : memref<16x384xf32, #tpu.memory_space<vmem>>, vector<16x384xf32>
    %c0_1 = arith.constant 0 : index
    %c0_2 = arith.constant 0 : index
    %1 = vector.load %arg2[%c0_1, %c0_2] : memref<8x384xf32, #tpu.memory_space<vmem>>, vector<8x384xf32>
    %2 = vector.extract_strided_slice %1 {offsets = [2, 0], sizes = [1, 384], strides = [1, 1]} : vector<8x384xf32> to vector<1x384xf32>
    %3 = vector.broadcast %2 : vector<1x384xf32> to vector<16x384xf32>
    %4 = arith.mulf %0, %3 : vector<16x384xf32>
    %c383_i32 = arith.constant 383 : i32
    %5 = tpu.dynamic_rotate %0 by %c383_i32 dim 1 : vector<16x384xf32>, i32 -> vector<16x384xf32>
    %6 = vector.extract_strided_slice %1 {offsets = [3, 0], sizes = [1, 384], strides = [1, 1]} : vector<8x384xf32> to vector<1x384xf32>
    %7 = vector.broadcast %6 : vector<1x384xf32> to vector<16x384xf32>
    %8 = arith.mulf %5, %7 : vector<16x384xf32>
    %9 = arith.addf %4, %8 : vector<16x384xf32>
    %c382_i32 = arith.constant 382 : i32
    %10 = tpu.dynamic_rotate %0 by %c382_i32 dim 1 : vector<16x384xf32>, i32 -> vector<16x384xf32>
    %11 = vector.extract_strided_slice %1 {offsets = [4, 0], sizes = [1, 384], strides = [1, 1]} : vector<8x384xf32> to vector<1x384xf32>
    %12 = vector.broadcast %11 : vector<1x384xf32> to vector<16x384xf32>
    %13 = arith.mulf %10, %12 : vector<16x384xf32>
    %14 = arith.addf %9, %13 : vector<16x384xf32>
    %c1_i32 = arith.constant 1 : i32
    %15 = tpu.dynamic_rotate %0 by %c1_i32 dim 1 : vector<16x384xf32>, i32 -> vector<16x384xf32>
    %16 = vector.extract_strided_slice %1 {offsets = [1, 0], sizes = [1, 384], strides = [1, 1]} : vector<8x384xf32> to vector<1x384xf32>
    %17 = vector.broadcast %16 : vector<1x384xf32> to vector<16x384xf32>
    %18 = arith.mulf %15, %17 : vector<16x384xf32>
    %19 = arith.addf %14, %18 : vector<16x384xf32>
    %c2_i32 = arith.constant 2 : i32
    %20 = tpu.dynamic_rotate %0 by %c2_i32 dim 1 : vector<16x384xf32>, i32 -> vector<16x384xf32>
    %21 = vector.extract_strided_slice %1 {offsets = [0, 0], sizes = [1, 384], strides = [1, 1]} : vector<8x384xf32> to vector<1x384xf32>
    %22 = vector.broadcast %21 : vector<1x384xf32> to vector<16x384xf32>
    %23 = arith.mulf %20, %22 : vector<16x384xf32>
    %24 = arith.addf %19, %23 : vector<16x384xf32>
    %c0_3 = arith.constant 0 : index
    %c0_4 = arith.constant 0 : index
    %25 = vector.load %arg3[%c0_3, %c0_4] : memref<16x384xf32, #tpu.memory_space<vmem>>, vector<16x384xf32>
    tpu.vector_store %arg3[%c0_3, %c0_4], %24 {strides = array<i32>} : memref<16x384xf32, #tpu.memory_space<vmem>>, vector<16x384xf32>,
    return
  }
  func.func @transform_0(%arg0: i32) -> (i32, i32) {
    %c0_i32 = arith.constant 0 : i32
    %c0_i32_0 = arith.constant 0 : i32
    return %arg0, %c0_i32 : i32, i32
  }
  func.func @transform_1(%arg0: i32) -> (i32, i32) {
    %c0_i32 = arith.constant 0 : i32
    %c0_i32_0 = arith.constant 0 : i32
    %c0_i32_1 = arith.constant 0 : i32
    return %c0_i32, %c0_i32_0 : i32, i32
  }
  func.func @transform_2(%arg0: i32) -> (i32, i32) {
    %c0_i32 = arith.constant 0 : i32
    %c0_i32_0 = arith.constant 0 : i32
    return %arg0, %c0_i32 : i32, i32
  }
}

</mosaic_0001>

<llo_original>
// kernel: tpu_custom_call.1
$region0: #{tpu_custom_call.1}
  #allocation0 [shape = 'u32[]', space=smem, size = 0x4, offset = 0x4, fixed_abs, tag = 'smem constant byte address 0x4 - core index']
  #allocation1 [shape = 'u32[144,128]{1,0:T(1,128)}', space=vmem, size = 0x12000, scoped, tag = 'internal scratch']
  %s0 = inlined_call_operand.hbm [shape: f32[16,384], index: 0, kind: input, shape index: {}]
  %s1 = inlined_call_operand.hbm [shape: f32[8,384], index: 1, kind: input, shape index: {}]
  %s2 = inlined_call_operand.hbm [shape: f32[16,384], index: 2, kind: output, shape index: {}]
  %s3 = sld [smem:[#allocation0]]
  $region26: #{tpu_custom_call.1} parent=0
    _
  %s5 = ssub.s32 1, %s3
  %s6 = scalar_select 0, %s5, %s3
  $region1: #{tpu_custom_call.1} parent=0
    #allocation2 [shape = 'u8[24576]{0}', space=vmem, size = 0x6000, scoped, tag = 'input window, operand 0, single buffered']
    #allocation3 [shape = 's32[1]{0}', space=sflag, size = 0x4, scoped, tag = 'scoped memory for tpu_custom_call.1']
    #allocation4 [shape = 's32[1]{0}', space=sflag, size = 0x4, scoped, tag = 'scoped memory for tpu_custom_call.1']
    #allocation5 [shape = 'u8[12288]{0}', space=vmem, size = 0x3000, scoped, tag = 'input window, operand 1, single buffered']
    #allocation6 [shape = 's32[1]{0}', space=sflag, size = 0x4, scoped, tag = 'scoped memory for tpu_custom_call.1']
    #allocation7 [shape = 'u8[24576]{0}', space=vmem, size = 0x6000, scoped, tag = 'output window, operand 0, single buffered']
    %7 = vsyncpa [#allocation3], 0
    %8 = vsyncpa [#allocation6], 0
    %9 = vsyncpa [#allocation4], 0
    // Predicated region
    $region2: #{tpu_custom_call.1} parent=1 // pred_check
      _
    $region3: #{tpu_custom_call.1} parent=1 // pred_check_branch
      %11 = sbr.rel (0) target = $region5
    $region4: #{tpu_custom_call.1} parent=1 // pred_region
      %s13 = ssub.s32 768, 768
      %14 = vsyncadd [#allocation3], %s13
      %s15 = sshll.u32 [#allocation2], 4
      %s16 = int_to_ptr.vmem [resolvable:$true] %s15
      %21 = dma.hbm_to_vmem [thread:$0]  %s0, 768, %s16, [#allocation3], 384, 384, 24
    $region5: #{tpu_custom_call.1} parent=1 // pred_fallthru
      _
    // Predicated region
    $region6: #{tpu_custom_call.1} parent=1 // pred_check
      _
    $region7: #{tpu_custom_call.1} parent=1 // pred_check_branch
      %23 = sbr.rel (0) target = $region9
    $region8: #{tpu_custom_call.1} parent=1 // pred_region
      %s25 = ssub.s32 384, 384
      %26 = vsyncadd [#allocation6], %s25
      %s28 = sshll.u32 [#allocation5], 4
      %s29 = int_to_ptr.vmem [resolvable:$true] %s28
      %31 = dma.hbm_to_vmem [thread:$0]  %s1, 384, %s29, [#allocation6]
    $region9: #{tpu_custom_call.1} parent=1 // pred_fallthru
      _
    // Predicated region
    $region10: #{tpu_custom_call.1} parent=1 // pred_check
      _
    $region11: #{tpu_custom_call.1} parent=1 // pred_check_branch
      %33 = sbr.rel (0) target = $region13
    $region12: #{tpu_custom_call.1} parent=1 // pred_region
      %34 = dma.done [#allocation3], 768
    $region13: #{tpu_custom_call.1} parent=1 // pred_fallthru
      _
    // Predicated region
    $region14: #{tpu_custom_call.1} parent=1 // pred_check
      _
    $region15: #{tpu_custom_call.1} parent=1 // pred_check_branch
      %36 = sbr.rel (0) target = $region17
    $region16: #{tpu_custom_call.1} parent=1 // pred_region
      %37 = dma.done [#allocation6], 384
    $region17: #{tpu_custom_call.1} parent=1 // pred_fallthru
      _
    %v38 = vld [vmem:[#allocation2] sm:$0xff]
    %v39 = vld [vmem:[#allocation2 + $0x8] sm:$0xff]
    %v40 = vld [vmem:[#allocation2 + $0x10] sm:$0xff]
    %v41 = vld [vmem:[#allocation2 + $0x18] sm:$0xff]
    %v42 = vld [vmem:[#allocation2 + $0x20] sm:$0xff]
    %v43 = vld [vmem:[#allocation2 + $0x28] sm:$0xff]
    %v44 = vld [vmem:[#allocation5] sm:$0xff]
    %v45 = vld [vmem:[#allocation5 + $0x8] sm:$0xff]
    %v46 = vld [vmem:[#allocation5 + $0x10] sm:$0xff]
    %v47 = vlaneseq
    %v48 = vshrl.u32 %v47, 7
    %v49 = vsub.s32 2, %v48
    %v50 = vrot.slane %v44, %v49
    %v51 = vlaneseq
    %v52 = vshrl.u32 %v51, 7
    %v53 = vsub.s32 2, %v52
    %v54 = vrot.slane %v45, %v53
    %v55 = vlaneseq
    %v56 = vshrl.u32 %v55, 7
    %v57 = vsub.s32 2, %v56
    %v58 = vrot.slane %v46, %v57
    %v59 = vmul.f32 %v38, %v50
    %v60 = vmul.f32 %v39, %v54
    %v61 = vmul.f32 %v40, %v58
    %v62 = vmul.f32 %v41, %v50
    %v63 = vmul.f32 %v42, %v54
    %v64 = vmul.f32 %v43, %v58
    %65 = vrot.lane.b32.xlu0 %v38, 127
    %v66 = vpop.permute.xlu0 %65
    %67 = vrot.lane.b32.xlu0 %v41, 127
    %v68 = vpop.permute.xlu0 %67
    %69 = vrot.lane.b32.xlu0 %v39, 127
    %v70 = vpop.permute.xlu0 %69
    %71 = vrot.lane.b32.xlu0 %v42, 127
    %v72 = vpop.permute.xlu0 %71
    %73 = vrot.lane.b32.xlu0 %v40, 127
    %v74 = vpop.permute.xlu0 %73
    %75 = vrot.lane.b32.xlu0 %v43, 127
    %v76 = vpop.permute.xlu0 %75
    %v77 = vlaneseq
    %v78 = vand.u32 %v77, 127
    %vm79 = vcmp.lt.s32.totalorder %v78, 127
    %v80 = vsel %vm79, %v70, %v74
    %v81 = vsel %vm79, %v72, %v76
    %v82 = vsel %vm79, %v66, %v70
    %v83 = vsel %vm79, %v68, %v72
    %v84 = vsel %vm79, %v74, %v66
    %v85 = vsel %vm79, %v76, %v68
    %v86 = vlaneseq
    %v87 = vshrl.u32 %v86, 7
    %v88 = vsub.s32 3, %v87
    %v89 = vrot.slane %v44, %v88
    %v90 = vlaneseq
    %v91 = vshrl.u32 %v90, 7
    %v92 = vsub.s32 3, %v91
    %v93 = vrot.slane %v45, %v92
    %v94 = vlaneseq
    %v95 = vshrl.u32 %v94, 7
    %v96 = vsub.s32 3, %v95
    %v97 = vrot.slane %v46, %v96
    %v98 = vmul.f32 %v82, %v89
    %v99 = vmul.f32 %v80, %v93
    %v100 = vmul.f32 %v84, %v97
    %v101 = vmul.f32 %v83, %v89
    %v102 = vmul.f32 %v81, %v93
    %v103 = vmul.f32 %v85, %v97
    %v104 = vadd.f32 %v59, %v98
    %v105 = vadd.f32 %v60, %v99
    %v106 = vadd.f32 %v61, %v100
    %v107 = vadd.f32 %v62, %v101
    %v108 = vadd.f32 %v63, %v102
    %v109 = vadd.f32 %v64, %v103
    %110 = vrot.lane.b32.xlu0 %v38, 126
    %v111 = vpop.permute.xlu0 %110
    %112 = vrot.lane.b32.xlu0 %v41, 126
    %v113 = vpop.permute.xlu0 %112
    %114 = vrot.lane.b32.xlu0 %v39, 126
    %v115 = vpop.permute.xlu0 %114
    %116 = vrot.lane.b32.xlu0 %v42, 126
    %v117 = vpop.permute.xlu0 %116
    %118 = vrot.lane.b32.xlu0 %v40, 126
    %v119 = vpop.permute.xlu0 %118
    %120 = vrot.lane.b32.xlu0 %v43, 126
    %v121 = vpop.permute.xlu0 %120
    %vm122 = vcmp.lt.s32.totalorder %v78, 126
    %v123 = vsel %vm122, %v115, %v119
    %v124 = vsel %vm122, %v117, %v121
    %v125 = vsel %vm122, %v111, %v115
    %v126 = vsel %vm122, %v113, %v117
    %v127 = vsel %vm122, %v119, %v111
    %v128 = vsel %vm122, %v121, %v113
    %v129 = vlaneseq
    %v130 = vshrl.u32 %v129, 7
    %v131 = vsub.s32 4, %v130
    %v132 = vrot.slane %v44, %v131
    %v133 = vlaneseq
    %v134 = vshrl.u32 %v133, 7
    %v135 = vsub.s32 4, %v134
    %v136 = vrot.slane %v45, %v135
    %v137 = vlaneseq
    %v138 = vshrl.u32 %v137, 7
    %v139 = vsub.s32 4, %v138
    %v140 = vrot.slane %v46, %v139
    %v141 = vmul.f32 %v125, %v132
    %v142 = vmul.f32 %v123, %v136
    %v143 = vmul.f32 %v127, %v140
    %v144 = vmul.f32 %v126, %v132
    %v145 = vmul.f32 %v124, %v136
    %v146 = vmul.f32 %v128, %v140
    %v147 = vadd.f32 %v104, %v141
    %v148 = vadd.f32 %v105, %v142
    %v149 = vadd.f32 %v106, %v143
    %v150 = vadd.f32 %v107, %v144
    %v151 = vadd.f32 %v108, %v145
    %v152 = vadd.f32 %v109, %v146
    %153 = vrot.lane.b32.xlu0 %v38, 1
    %v154 = vpop.permute.xlu0 %153
    %155 = vrot.lane.b32.xlu0 %v41, 1
    %v156 = vpop.permute.xlu0 %155
    %157 = vrot.lane.b32.xlu0 %v39, 1
    %v158 = vpop.permute.xlu0 %157
    %159 = vrot.lane.b32.xlu0 %v42, 1
    %v160 = vpop.permute.xlu0 %159
    %161 = vrot.lane.b32.xlu0 %v40, 1
    %v162 = vpop.permute.xlu0 %161
    %163 = vrot.lane.b32.xlu0 %v43, 1
    %v164 = vpop.permute.xlu0 %163
    %vm165 = vcmp.lt.s32.totalorder %v78, 1
    %v166 = vsel %vm165, %v158, %v162
    %v167 = vsel %vm165, %v160, %v164
    %v168 = vsel %vm165, %v154, %v158
    %v169 = vsel %vm165, %v156, %v160
    %v170 = vsel %vm165, %v162, %v154
    %v171 = vsel %vm165, %v164, %v156
    %v172 = vlaneseq
    %v173 = vshrl.u32 %v172, 7
    %v174 = vsub.s32 1, %v173
    %v175 = vrot.slane %v44, %v174
    %v176 = vlaneseq
    %v177 = vshrl.u32 %v176, 7
    %v178 = vsub.s32 1, %v177
    %v179 = vrot.slane %v45, %v178
    %v180 = vlaneseq
    %v181 = vshrl.u32 %v180, 7
    %v182 = vsub.s32 1, %v181
    %v183 = vrot.slane %v46, %v182
    %v184 = vmul.f32 %v170, %v175
    %v185 = vmul.f32 %v168, %v179
    %v186 = vmul.f32 %v166, %v183
    %v187 = vmul.f32 %v171, %v175
    %v188 = vmul.f32 %v169, %v179
    %v189 = vmul.f32 %v167, %v183
    %v190 = vadd.f32 %v147, %v184
    %v191 = vadd.f32 %v148, %v185
    %v192 = vadd.f32 %v149, %v186
    %v193 = vadd.f32 %v150, %v187
    %v194 = vadd.f32 %v151, %v188
    %v195 = vadd.f32 %v152, %v189
    %196 = vrot.lane.b32.xlu0 %v38, 2
    %v197 = vpop.permute.xlu0 %196
    %198 = vrot.lane.b32.xlu0 %v41, 2
    %v199 = vpop.permute.xlu0 %198
    %200 = vrot.lane.b32.xlu0 %v39, 2
    %v201 = vpop.permute.xlu0 %200
    %202 = vrot.lane.b32.xlu0 %v42, 2
    %v203 = vpop.permute.xlu0 %202
    %204 = vrot.lane.b32.xlu0 %v40, 2
    %v205 = vpop.permute.xlu0 %204
    %206 = vrot.lane.b32.xlu0 %v43, 2
    %v207 = vpop.permute.xlu0 %206
    %vm208 = vcmp.lt.s32.totalorder %v78, 2
    %v209 = vsel %vm208, %v201, %v205
    %v210 = vsel %vm208, %v203, %v207
    %v211 = vsel %vm208, %v197, %v201
    %v212 = vsel %vm208, %v199, %v203
    %v213 = vsel %vm208, %v205, %v197
    %v214 = vsel %vm208, %v207, %v199
    %v215 = vlaneseq
    %v216 = vshrl.u32 %v215, 7
    %v217 = vsub.s32 0, %v216
    %v218 = vrot.slane %v44, %v217
    %v219 = vlaneseq
    %v220 = vshrl.u32 %v219, 7
    %v221 = vsub.s32 0, %v220
    %v222 = vrot.slane %v45, %v221
    %v223 = vlaneseq
    %v224 = vshrl.u32 %v223, 7
    %v225 = vsub.s32 0, %v224
    %v226 = vrot.slane %v46, %v225
    %v227 = vmul.f32 %v213, %v218
    %v228 = vmul.f32 %v211, %v222
    %v229 = vmul.f32 %v209, %v226
    %v230 = vmul.f32 %v214, %v218
    %v231 = vmul.f32 %v212, %v222
    %v232 = vmul.f32 %v210, %v226
    %v233 = vadd.f32 %v190, %v227
    %v234 = vadd.f32 %v191, %v228
    %v235 = vadd.f32 %v192, %v229
    %v236 = vadd.f32 %v193, %v230
    %v237 = vadd.f32 %v194, %v231
    %v238 = vadd.f32 %v195, %v232
    %239 = vst [vmem:[#allocation7] sm:$0xff] %v233
    %240 = vst [vmem:[#allocation7 + $0x8] sm:$0xff] %v234
    %241 = vst [vmem:[#allocation7 + $0x10] sm:$0xff] %v235
    %242 = vst [vmem:[#allocation7 + $0x18] sm:$0xff] %v236
    %243 = vst [vmem:[#allocation7 + $0x20] sm:$0xff] %v237
    %244 = vst [vmem:[#allocation7 + $0x28] sm:$0xff] %v238
    // Predicated region
    $region18: #{tpu_custom_call.1} parent=1 // pred_check
      _
    $region19: #{tpu_custom_call.1} parent=1 // pred_check_branch
      %246 = sbr.rel (0) target = $region21
    $region20: #{tpu_custom_call.1} parent=1 // pred_region
      %s248 = ssub.s32 768, 768
      %249 = vsyncadd [#allocation4], %s248
      %s250 = sshll.u32 [#allocation7], 4
      %s251 = int_to_ptr.vmem [resolvable:$true] %s250
      %256 = dma.vmem_to_hbm [thread:$0]  %s251, 768, %s2, [#allocation4], 384, 384, 24
    $region21: #{tpu_custom_call.1} parent=1 // pred_fallthru
      _
    // Predicated region
    $region22: #{tpu_custom_call.1} parent=1 // pred_check
      _
    $region23: #{tpu_custom_call.1} parent=1 // pred_check_branch
      %258 = sbr.rel (0) target = $region25
    $region24: #{tpu_custom_call.1} parent=1 // pred_region
      %259 = dma.done [#allocation4], 768
    $region25: #{tpu_custom_call.1} parent=1 // pred_fallthru
      _
    %260 = vsyncpa [#allocation3], 1
    %261 = vsyncpa [#allocation6], 1
    %262 = vsyncpa [#allocation4], 1

</llo_original>
